<compile_context>
chip_gen: v7x
topology: tpu7x:2x2x1
jax: 0.10.0
libtpu: 0.0.40
codegen_flags: <defaults>
</compile_context>

<pallas_src>
import functools

import jax
import jax.numpy as jnp
from jax.experimental import pallas as pl
from jax.experimental.pallas import tpu as pltpu


def _round_up(x, m):
    return ((x + m - 1) // m) * m


# ----------------------------------------------------------------------------
# Fused Pallas kernel
# ----------------------------------------------------------------------------
def _fused_hn_kernel(p0a_ref, p1a_ref, s0a_ref, s1a_ref,
                     d01min_ref, d01ind_ref, d10min_ref, d10ind_ref,
                     posd2_ref, *, chunk, n_chunks):
    """One grid step: a lane tile of TNp positives against ALL mined negatives.

    Inputs (augmented in the wrapper, all f32):
      p0a_ref, p1a_ref : (Da, TNp)   positives^T; rows = [features, 1, 0-pad]
      s0a_ref, s1a_ref : (Nn_pad, Da) negatives;  cols = [-2*features, ||f||^2, 0-pad]
                         padded rows carry ||f||^2 = 1e30 so they never win the min.
    dot(s_aug, p_aug)[j, i] = ||s_j||^2 - 2<s_j, p_i>  (squared distance minus the
    per-column constant ||p_i||^2) directly from the MXU.

    Outputs (lane-dense (1, TNp)):
      d01min/d01ind : min_j ||posF0_i - subF1_j||, argmin row into subF1
      d10min/d10ind : min_j ||posF1_i - subF0_j||, argmin row into subF0
      posd2         : ||posF0_i - posF1_i||^2
    """
    p0a = p0a_ref[...]                      # (Da, TNp)
    p1a = p1a_ref[...]
    tnp = p0a.shape[1]

    # Local row ids for the per-chunk argmin — hoisted out of the chunk loop.
    rows_local = jax.lax.broadcasted_iota(jnp.int32, (chunk, tnp), 0)

    def one_direction(s_ref, p_aug):
        """Streaming min/argmin over the negatives axis, `chunk` rows at a time."""
        def body(c, carry):
            run_min, run_ind = carry
            off = pl.multiple_of(c * chunk, chunk)
            s_c = s_ref[pl.ds(off, chunk), :]                          # (chunk, Da)
            # (chunk, Da) @ (Da, TNp): distance (minus ||p||^2) off the MXU.
            d = jax.lax.dot_general(s_c, p_aug, (((1,), (0,)), ((), ())),
                                    preferred_element_type=jnp.float32)
            cmin = jnp.min(d, axis=0, keepdims=True)                   # (1, TNp)
            cind = jnp.min(jnp.where(d == cmin, rows_local, chunk),
                           axis=0, keepdims=True)                      # first hit
            upd = cmin < run_min                       # strict: earlier chunk wins ties
            run_min = jnp.where(upd, cmin, run_min)
            run_ind = jnp.where(upd, cind + c * chunk, run_ind)
            return run_min, run_ind

        init = (jnp.full((1, tnp), jnp.inf, dtype=jnp.float32),
                jnp.zeros((1, tnp), dtype=jnp.int32))
        return jax.lax.fori_loop(0, n_chunks, body, init, unroll=True)

    m01, i01 = one_direction(s1a_ref, p0a)      # posF0 vs subF1
    m10, i10 = one_direction(s0a_ref, p1a)      # posF1 vs subF0

    # ||p||^2 deferred to the minima row: summing ALL augmented rows gives
    # ||features||^2 + 1 (the ones row), so subtract 1.
    p0sq1 = jnp.sum(p0a * p0a, axis=0, keepdims=True)
    p1sq1 = jnp.sum(p1a * p1a, axis=0, keepdims=True)

    # sqrt only on the (1, TNp) minima, matching pdist(..., 'L2') = sqrt(d2 + 1e-7).
    d01min_ref[...] = jnp.sqrt(jnp.maximum(m01 + (p0sq1 - 1.0), 0.0) + 1e-7)
    d01ind_ref[...] = i01
    d10min_ref[...] = jnp.sqrt(jnp.maximum(m10 + (p1sq1 - 1.0), 0.0) + 1e-7)
    d10ind_ref[...] = i10

    # Positive squared distance; the ones row and zero-pad rows cancel in the diff.
    diff = p0a - p1a
    posd2_ref[...] = jnp.sum(diff * diff, axis=0, keepdims=True)


# ----------------------------------------------------------------------------
# Wrapper: operand augmentation + pallas_call
# ----------------------------------------------------------------------------
def _augment_positives(posF, np_pad, da):
    n, d = posF.shape
    f = posF.astype(jnp.float32)
    cols = jnp.concatenate(
        [f, jnp.ones((n, 1), jnp.float32), jnp.zeros((n, da - d - 1), jnp.float32)],
        axis=1)                                           # (n, da)
    cols = jnp.pad(cols, ((0, np_pad - n), (0, 0)))       # padded columns are all-zero
    return cols.T                                         # (da, np_pad)


def _augment_negatives(subF, nn_pad, da, big=1e30):
    n, d = subF.shape
    f = subF.astype(jnp.float32)
    sq = jnp.sum(f * f, axis=1, keepdims=True)
    rows = jnp.concatenate(
        [-2.0 * f, sq, jnp.zeros((n, da - d - 1), jnp.float32)], axis=1)   # (n, da)
    if nn_pad > n:
        pad = jnp.zeros((nn_pad - n, da), jnp.float32).at[:, d].set(big)
        rows = jnp.concatenate([rows, pad], axis=0)
    return rows                                            # (nn_pad, da)


def fused_hardest_negative(posF0, posF1, subF0, subF1):
    n_pos, d_feat = posF0.shape
    n_neg0 = subF0.shape[0]
    n_neg1 = subF1.shape[0]

    da = _round_up(d_feat + 1, 8)                 # augmented feature rows (sublane-aligned)

    # --- positives (lane) axis: always pad to a lane-aligned tile size ------
    np128 = _round_up(n_pos, 128)
    if np128 <= 512:
        tnp = np128
    else:
        best = None
        for cand in (512, 384, 256):              # least padding wins, ties -> bigger tile
            padded = _round_up(n_pos, cand)
            if best is None or padded < best[0] or (padded == best[0] and cand > best[1]):
                best = (padded, cand)
        tnp = best[1]
    np_pad = _round_up(n_pos, tnp)
    grid = (np_pad // tnp,)

    # --- negatives axis: VMEM-resident block, streamed in `chunk`-row slabs --
    n_neg = max(n_neg0, n_neg1)
    chunk = min(256, _round_up(n_neg, 8))
    nn_pad = _round_up(n_neg, chunk)
    n_chunks = nn_pad // chunk

    p0a = _augment_positives(posF0, np_pad, da)   # (da, np_pad)
    p1a = _augment_positives(posF1, np_pad, da)
    s0a = _augment_negatives(subF0, nn_pad, da)   # (nn_pad, da)
    s1a = _augment_negatives(subF1, nn_pad, da)

    pos_spec = pl.BlockSpec((da, tnp), lambda i: (0, i))
    neg_spec = pl.BlockSpec((nn_pad, da), lambda i: (0, 0))   # resident across steps
    row_f = pl.BlockSpec((1, tnp), lambda i: (0, i))
    row_i = pl.BlockSpec((1, tnp), lambda i: (0, i))

    kernel = functools.partial(_fused_hn_kernel, chunk=chunk, n_chunks=n_chunks)

    flops = 4 * nn_pad * np_pad * da              # two (nn, da) @ (da, np) matmuls
    bytes_accessed = 4 * (2 * da * np_pad + 2 * nn_pad * da + 5 * np_pad)

    d01min, d01ind, d10min, d10ind, posd2 = pl.pallas_call(
        kernel,
        grid=grid,
        in_specs=[pos_spec, pos_spec, neg_spec, neg_spec],
        out_specs=(row_f, row_i, row_f, row_i, row_f),
        out_shape=(
            jax.ShapeDtypeStruct((1, np_pad), jnp.float32),
            jax.ShapeDtypeStruct((1, np_pad), jnp.int32),
            jax.ShapeDtypeStruct((1, np_pad), jnp.float32),
            jax.ShapeDtypeStruct((1, np_pad), jnp.int32),
            jax.ShapeDtypeStruct((1, np_pad), jnp.float32),
        ),
        compiler_params=pltpu.CompilerParams(
            dimension_semantics=("parallel",),
        ),
        cost_estimate=pl.CostEstimate(
            flops=flops, transcendentals=2 * np_pad, bytes_accessed=bytes_accessed),
    )(p0a, p1a, s0a, s1a)

    return (d01min[0, :n_pos], d01ind[0, :n_pos],
            d10min[0, :n_pos], d10ind[0, :n_pos], posd2[0, :n_pos])


# ----------------------------------------------------------------------------
# Loss module forward (JAX glue around the fused Pallas kernel)
# ----------------------------------------------------------------------------
def contrastive_hardest_negative_loss(
    F0, F1, matches, *, pos_thresh, neg_thresh, num_pos, num_hn_samples, key
):
    N0, N1 = F0.shape[0], F1.shape[0]
    P = matches.shape[0]

    k0, k1, k2 = jax.random.split(key, 3)
    # np.random.choice(..., replace=False) -> random permutation prefix
    sel0 = jax.random.permutation(k0, N0)[: min(N0, num_hn_samples)]
    sel1 = jax.random.permutation(k1, N1)[: min(N1, num_hn_samples)]

    if P > num_pos:
        pos_sel = jax.random.permutation(k2, P)[:num_pos]
        sample_pos_pairs = matches[pos_sel]
    else:
        sample_pos_pairs = matches

    pos_ind0 = sample_pos_pairs[:, 0]
    pos_ind1 = sample_pos_pairs[:, 1]

    # TODO(synk): these gathers could be folded into the kernel via
    # PrefetchScalarGridSpec + per-row DMA; at these sizes the XLA gather
    # (fused with the augmentation/transpose) is cheaper than tiny row DMAs.
    subF0 = jnp.take(F0, sel0, axis=0)
    subF1 = jnp.take(F1, sel1, axis=0)
    posF0 = jnp.take(F0, pos_ind0, axis=0)
    posF1 = jnp.take(F1, pos_ind1, axis=0)

    # --- hot path: one fused Pallas kernel ---
    D01min, D01ind, D10min, D10ind, pos_d2 = fused_hardest_negative(
        posF0, posF1, subF0, subF1)

    # map argmin indices back to original F1 / F0 row indices
    neg_ind1 = jnp.take(sel1, D01ind)
    neg_ind0 = jnp.take(sel0, D10ind)

    # False-negative masks: exact pair comparison (equivalent to the reference
    # int64 hash + isin, since the hash is injective; avoids int32 overflow).
    m0 = matches[:, 0][None, :]
    m1 = matches[:, 1][None, :]
    mask0 = ~jnp.any((pos_ind0[:, None] == m0) & (neg_ind1[:, None] == m1), axis=1)
    mask1 = ~jnp.any((neg_ind0[:, None] == m0) & (pos_ind1[:, None] == m1), axis=1)

    pos_loss = jnp.mean(jax.nn.relu(pos_d2 - pos_thresh))

    neg0 = jax.nn.relu(neg_thresh - D01min) ** 2
    neg1 = jax.nn.relu(neg_thresh - D10min) ** 2
    # NOTE: if every mined negative collides with a positive pair the count is
    # 0 and this is NaN — same as torch .mean() over an empty tensor.
    neg_loss0 = jnp.sum(jnp.where(mask0, neg0, 0.0)) / jnp.sum(mask0).astype(jnp.float32)
    neg_loss1 = jnp.sum(jnp.where(mask1, neg1, 0.0)) / jnp.sum(mask1).astype(jnp.float32)
    neg_loss = (neg_loss0 + neg_loss1) / 2.0

    return pos_loss + neg_loss


# ----------------------------------------------------------------------------
if __name__ == "__main__":
    key = jax.random.PRNGKey(0)
    kF0, kF1, km0, km1, ksel = jax.random.split(key, 5)

    # Small, module-consistent shapes: point-cloud features (N, D) + matches (P, 2)
    N0, N1, D, P = 96, 80, 32, 64
    F0 = jax.random.normal(kF0, (N0, D), dtype=jnp.float32)
    F1 = jax.random.normal(kF1, (N1, D), dtype=jnp.float32)
    m0 = jax.random.randint(km0, (P,), 0, N0, dtype=jnp.int32)
    m1 = jax.random.randint(km1, (P,), 0, N1, dtype=jnp.int32)
    matches = jnp.stack([m0, m1], axis=1)

    loss_fn = functools.partial(
        contrastive_hardest_negative_loss,
        pos_thresh=0.1,
        neg_thresh=1.4,
        num_pos=32,          # < P so positive pairs are subsampled
        num_hn_samples=48,   # < N0, N1 so negatives are mined from a subset
        key=ksel,
    )
    loss = jax.jit(loss_fn)(F0, F1, matches)
    jax.block_until_ready(loss)
    assert jnp.isfinite(loss)
    print("KERNEL_OK")
</pallas_src>

<mosaic_0001>
module attributes {stable_mosaic.version = 11 : i64} {
  func.func @_fused_hn_kernel(%arg0: i32, %arg1: memref<40x128xf32, #tpu.memory_space<vmem>>, %arg2: memref<40x128xf32, #tpu.memory_space<vmem>>, %arg3: memref<48x40xf32, #tpu.memory_space<vmem>>, %arg4: memref<48x40xf32, #tpu.memory_space<vmem>>, %arg5: memref<1x128xf32, #tpu.memory_space<vmem>>, %arg6: memref<1x128xi32, #tpu.memory_space<vmem>>, %arg7: memref<1x128xf32, #tpu.memory_space<vmem>>, %arg8: memref<1x128xi32, #tpu.memory_space<vmem>>, %arg9: memref<1x128xf32, #tpu.memory_space<vmem>>) attributes {dimension_semantics = [#tpu.dimension_semantics<parallel>], iteration_bounds = array<i64: 1>, scalar_prefetch = 0 : i64, scratch_operands = 0 : i64, tpu.core_type = #tpu.core_type<tc>, window_params = [{transform_indices = @transform_0, window_bounds = array<i64: 40, 128>}, {transform_indices = @transform_1, window_bounds = array<i64: 40, 128>}, {pipeline_mode = #tpu.pipeline_mode<synchronous>, transform_indices = @transform_2, window_bounds = array<i64: 48, 40>}, {pipeline_mode = #tpu.pipeline_mode<synchronous>, transform_indices = @transform_3, window_bounds = array<i64: 48, 40>}, {transform_indices = @transform_4, window_bounds = array<i64: 1, 128>}, {transform_indices = @transform_5, window_bounds = array<i64: 1, 128>}, {transform_indices = @transform_6, window_bounds = array<i64: 1, 128>}, {transform_indices = @transform_7, window_bounds = array<i64: 1, 128>}, {transform_indices = @transform_8, window_bounds = array<i64: 1, 128>}]} {
    %c0 = arith.constant 0 : index
    %c0_0 = arith.constant 0 : index
    %0 = vector.load %arg1[%c0, %c0_0] : memref<40x128xf32, #tpu.memory_space<vmem>>, vector<40x128xf32>
    %c0_1 = arith.constant 0 : index
    %c0_2 = arith.constant 0 : index
    %1 = vector.load %arg2[%c0_1, %c0_2] : memref<40x128xf32, #tpu.memory_space<vmem>>, vector<40x128xf32>
    %2 = tpu.iota {dimensions = array<i32: 0>} : vector<48x128xi32>
    %cst = arith.constant 0x7F800000 : f32
    %3 = vector.broadcast %cst : f32 to vector<1x128xf32>
    %c0_i32 = arith.constant 0 : i32
    %4 = vector.broadcast %c0_i32 : i32 to vector<1x128xi32>
    %c0_i32_3 = arith.constant 0 : i32
    %c48_i32 = arith.constant 48 : i32
    %5 = arith.muli %c0_i32_3, %c48_i32 : i32
    %6 = tpu.assume_multiple %5, 48 : i32
    %7 = arith.index_cast %6 : i32 to index
    %c0_4 = arith.constant 0 : index
    %8 = vector.load %arg4[%7, %c0_4] : memref<48x40xf32, #tpu.memory_space<vmem>>, vector<48x40xf32>
    %cst_5 = arith.constant dense<0.000000e+00> : vector<48x128xf32>
    %9 = tpu.matmul %8, %0, %cst_5 {dimension_numbers = #tpu.dot_dimension_numbers<[1], [0], [0], [1], [0, 0, 1, 1], [], []>} : vector<48x40xf32>, vector<40x128xf32>, vector<48x128xf32> -> vector<48x128xf32>
    %cst_6 = arith.constant dense<0x7F800000> : vector<128xf32>
    %10 = vector.multi_reduction <minimumf>, %9, %cst_6 [0] : vector<48x128xf32> to vector<128xf32>
    %11 = vector.shape_cast %10 : vector<128xf32> to vector<1x128xf32>
    %12 = vector.broadcast %11 : vector<1x128xf32> to vector<48x128xf32>
    %13 = arith.cmpf oeq, %9, %12 : vector<48x128xf32>
    %c48_i32_7 = arith.constant 48 : i32
    %14 = vector.broadcast %c48_i32_7 : i32 to vector<48x128xi32>
    %15 = arith.select %13, %2, %14 : vector<48x128xi1>, vector<48x128xi32>
    %cst_8 = arith.constant dense<2147483647> : vector<128xi32>
    %16 = vector.multi_reduction <minsi>, %15, %cst_8 [0] : vector<48x128xi32> to vector<128xi32>
    %17 = vector.shape_cast %16 : vector<128xi32> to vector<1x128xi32>
    %18 = arith.cmpf olt, %11, %3 : vector<1x128xf32>
    %19 = arith.select %18, %11, %3 : vector<1x128xi1>, vector<1x128xf32>
    %c48_i32_9 = arith.constant 48 : i32
    %20 = arith.muli %c0_i32_3, %c48_i32_9 : i32
    %21 = vector.broadcast %20 : i32 to vector<1x128xi32>
    %22 = arith.addi %17, %21 : vector<1x128xi32>
    %23 = arith.select %18, %22, %4 : vector<1x128xi1>, vector<1x128xi32>
    %c1_i32 = arith.constant 1 : i32
    %cst_10 = arith.constant 0x7F800000 : f32
    %24 = vector.broadcast %cst_10 : f32 to vector<1x128xf32>
    %c0_i32_11 = arith.constant 0 : i32
    %25 = vector.broadcast %c0_i32_11 : i32 to vector<1x128xi32>
    %c0_i32_12 = arith.constant 0 : i32
    %c48_i32_13 = arith.constant 48 : i32
    %26 = arith.muli %c0_i32_12, %c48_i32_13 : i32
    %27 = tpu.assume_multiple %26, 48 : i32
    %28 = arith.index_cast %27 : i32 to index
    %c0_14 = arith.constant 0 : index
    %29 = vector.load %arg3[%28, %c0_14] : memref<48x40xf32, #tpu.memory_space<vmem>>, vector<48x40xf32>
    %cst_15 = arith.constant dense<0.000000e+00> : vector<48x128xf32>
    %30 = tpu.matmul %29, %1, %cst_15 {dimension_numbers = #tpu.dot_dimension_numbers<[1], [0], [0], [1], [0, 0, 1, 1], [], []>} : vector<48x40xf32>, vector<40x128xf32>, vector<48x128xf32> -> vector<48x128xf32>
    %cst_16 = arith.constant dense<0x7F800000> : vector<128xf32>
    %31 = vector.multi_reduction <minimumf>, %30, %cst_16 [0] : vector<48x128xf32> to vector<128xf32>
    %32 = vector.shape_cast %31 : vector<128xf32> to vector<1x128xf32>
    %33 = vector.broadcast %32 : vector<1x128xf32> to vector<48x128xf32>
    %34 = arith.cmpf oeq, %30, %33 : vector<48x128xf32>
    %c48_i32_17 = arith.constant 48 : i32
    %35 = vector.broadcast %c48_i32_17 : i32 to vector<48x128xi32>
    %36 = arith.select %34, %2, %35 : vector<48x128xi1>, vector<48x128xi32>
    %cst_18 = arith.constant dense<2147483647> : vector<128xi32>
    %37 = vector.multi_reduction <minsi>, %36, %cst_18 [0] : vector<48x128xi32> to vector<128xi32>
    %38 = vector.shape_cast %37 : vector<128xi32> to vector<1x128xi32>
    %39 = arith.cmpf olt, %32, %24 : vector<1x128xf32>
    %40 = arith.select %39, %32, %24 : vector<1x128xi1>, vector<1x128xf32>
    %c48_i32_19 = arith.constant 48 : i32
    %41 = arith.muli %c0_i32_12, %c48_i32_19 : i32
    %42 = vector.broadcast %41 : i32 to vector<1x128xi32>
    %43 = arith.addi %38, %42 : vector<1x128xi32>
    %44 = arith.select %39, %43, %25 : vector<1x128xi1>, vector<1x128xi32>
    %c1_i32_20 = arith.constant 1 : i32
    %45 = arith.mulf %0, %0 : vector<40x128xf32>
    %cst_21 = arith.constant dense<0.000000e+00> : vector<128xf32>
    %46 = vector.multi_reduction <add>, %45, %cst_21 [0] : vector<40x128xf32> to vector<128xf32>
    %47 = vector.shape_cast %46 : vector<128xf32> to vector<1x128xf32>
    %48 = arith.mulf %1, %1 : vector<40x128xf32>
    %cst_22 = arith.constant dense<0.000000e+00> : vector<128xf32>
    %49 = vector.multi_reduction <add>, %48, %cst_22 [0] : vector<40x128xf32> to vector<128xf32>
    %50 = vector.shape_cast %49 : vector<128xf32> to vector<1x128xf32>
    %cst_23 = arith.constant 1.000000e+00 : f32
    %51 = vector.broadcast %cst_23 : f32 to vector<1x128xf32>
    %52 = arith.subf %47, %51 : vector<1x128xf32>
    %53 = arith.addf %19, %52 : vector<1x128xf32>
    %cst_24 = arith.constant 0.000000e+00 : f32
    %54 = vector.broadcast %cst_24 : f32 to vector<1x128xf32>
    %55 = arith.maximumf %53, %54 : vector<1x128xf32>
    %cst_25 = arith.constant 1.000000e-07 : f32
    %56 = vector.broadcast %cst_25 : f32 to vector<1x128xf32>
    %57 = arith.addf %55, %56 : vector<1x128xf32>
    %58 = math.sqrt %57 : vector<1x128xf32>
    %c0_26 = arith.constant 0 : index
    %c0_27 = arith.constant 0 : index
    %59 = vector.load %arg5[%c0_26, %c0_27] : memref<1x128xf32, #tpu.memory_space<vmem>>, vector<1x128xf32>
    tpu.vector_store %arg5[%c0_26, %c0_27], %58 {strides = array<i32>} : memref<1x128xf32, #tpu.memory_space<vmem>>, vector<1x128xf32>,
    %c0_28 = arith.constant 0 : index
    %c0_29 = arith.constant 0 : index
    %60 = vector.load %arg6[%c0_28, %c0_29] : memref<1x128xi32, #tpu.memory_space<vmem>>, vector<1x128xi32>
    tpu.vector_store %arg6[%c0_28, %c0_29], %23 {strides = array<i32>} : memref<1x128xi32, #tpu.memory_space<vmem>>, vector<1x128xi32>,
    %cst_30 = arith.constant 1.000000e+00 : f32
    %61 = vector.broadcast %cst_30 : f32 to vector<1x128xf32>
    %62 = arith.subf %50, %61 : vector<1x128xf32>
    %63 = arith.addf %40, %62 : vector<1x128xf32>
    %cst_31 = arith.constant 0.000000e+00 : f32
    %64 = vector.broadcast %cst_31 : f32 to vector<1x128xf32>
    %65 = arith.maximumf %63, %64 : vector<1x128xf32>
    %cst_32 = arith.constant 1.000000e-07 : f32
    %66 = vector.broadcast %cst_32 : f32 to vector<1x128xf32>
    %67 = arith.addf %65, %66 : vector<1x128xf32>
    %68 = math.sqrt %67 : vector<1x128xf32>
    %c0_33 = arith.constant 0 : index
    %c0_34 = arith.constant 0 : index
    %69 = vector.load %arg7[%c0_33, %c0_34] : memref<1x128xf32, #tpu.memory_space<vmem>>, vector<1x128xf32>
    tpu.vector_store %arg7[%c0_33, %c0_34], %68 {strides = array<i32>} : memref<1x128xf32, #tpu.memory_space<vmem>>, vector<1x128xf32>,
    %c0_35 = arith.constant 0 : index
    %c0_36 = arith.constant 0 : index
    %70 = vector.load %arg8[%c0_35, %c0_36] : memref<1x128xi32, #tpu.memory_space<vmem>>, vector<1x128xi32>
    tpu.vector_store %arg8[%c0_35, %c0_36], %44 {strides = array<i32>} : memref<1x128xi32, #tpu.memory_space<vmem>>, vector<1x128xi32>,
    %71 = arith.subf %0, %1 : vector<40x128xf32>
    %72 = arith.mulf %71, %71 : vector<40x128xf32>
    %cst_37 = arith.constant dense<0.000000e+00> : vector<128xf32>
    %73 = vector.multi_reduction <add>, %72, %cst_37 [0] : vector<40x128xf32> to vector<128xf32>
    %74 = vector.shape_cast %73 : vector<128xf32> to vector<1x128xf32>
    %c0_38 = arith.constant 0 : index
    %c0_39 = arith.constant 0 : index
    %75 = vector.load %arg9[%c0_38, %c0_39] : memref<1x128xf32, #tpu.memory_space<vmem>>, vector<1x128xf32>
    tpu.vector_store %arg9[%c0_38, %c0_39], %74 {strides = array<i32>} : memref<1x128xf32, #tpu.memory_space<vmem>>, vector<1x128xf32>,
    return
  }
  func.func @transform_0(%arg0: i32) -> (i32, i32) {
    %c0_i32 = arith.constant 0 : i32
    %c0_i32_0 = arith.constant 0 : i32
    return %c0_i32, %arg0 : i32, i32
  }
  func.func @transform_1(%arg0: i32) -> (i32, i32) {
    %c0_i32 = arith.constant 0 : i32
    %c0_i32_0 = arith.constant 0 : i32
    return %c0_i32, %arg0 : i32, i32
  }
  func.func @transform_2(%arg0: i32) -> (i32, i32) {
    %c0_i32 = arith.constant 0 : i32
    %c0_i32_0 = arith.constant 0 : i32
    %c0_i32_1 = arith.constant 0 : i32
    return %c0_i32, %c0_i32_0 : i32, i32
  }
  func.func @transform_3(%arg0: i32) -> (i32, i32) {
    %c0_i32 = arith.constant 0 : i32
    %c0_i32_0 = arith.constant 0 : i32
    %c0_i32_1 = arith.constant 0 : i32
    return %c0_i32, %c0_i32_0 : i32, i32
  }
  func.func @transform_4(%arg0: i32) -> (i32, i32) {
    %c0_i32 = arith.constant 0 : i32
    %c0_i32_0 = arith.constant 0 : i32
    return %c0_i32, %arg0 : i32, i32
  }
  func.func @transform_5(%arg0: i32) -> (i32, i32) {
    %c0_i32 = arith.constant 0 : i32
    %c0_i32_0 = arith.constant 0 : i32
    return %c0_i32, %arg0 : i32, i32
  }
  func.func @transform_6(%arg0: i32) -> (i32, i32) {
    %c0_i32 = arith.constant 0 : i32
    %c0_i32_0 = arith.constant 0 : i32
    return %c0_i32, %arg0 : i32, i32
  }
  func.func @transform_7(%arg0: i32) -> (i32, i32) {
    %c0_i32 = arith.constant 0 : i32
    %c0_i32_0 = arith.constant 0 : i32
    return %c0_i32, %arg0 : i32, i32
  }
  func.func @transform_8(%arg0: i32) -> (i32, i32) {
    %c0_i32 = arith.constant 0 : i32
    %c0_i32_0 = arith.constant 0 : i32
    return %c0_i32, %arg0 : i32, i32
  }
}

</mosaic_0001>

<llo_original>
// kernel: contrastive_hardest_negative_loss.3
$region0: #{contrastive_hardest_negative_loss.3}
  #allocation0 [shape = 'u32[]', space=smem, size = 0x4, offset = 0x4, fixed_abs, tag = 'smem constant byte address 0x4 - core index']
  #allocation1 [shape = 'u32[144,128]{1,0:T(1,128)}', space=vmem, size = 0x12000, scoped, tag = 'internal scratch']
  %s0 = inlined_call_operand.vmem [shape: f32[40,128], index: 0, kind: input, shape index: {}]
  %s1 = inlined_call_operand.vmem [shape: f32[40,128], index: 1, kind: input, shape index: {}]
  %s2 = inlined_call_operand.vmem [shape: f32[48,40], index: 2, kind: input, shape index: {}]
  %s3 = inlined_call_operand.vmem [shape: f32[48,40], index: 3, kind: input, shape index: {}]
  %s4 = inlined_call_operand.vmem [shape: f32[1,128], index: 4, kind: output, shape index: {0}]
  %s5 = inlined_call_operand.vmem [shape: s32[1,128], index: 5, kind: output, shape index: {1}]
  %s6 = inlined_call_operand.vmem [shape: f32[1,128], index: 6, kind: output, shape index: {2}]
  %s7 = inlined_call_operand.vmem [shape: s32[1,128], index: 7, kind: output, shape index: {3}]
  %s8 = inlined_call_operand.vmem [shape: f32[1,128], index: 8, kind: output, shape index: {4}]
  %9 = xla_tuple %s4, %s5, %s6, %s7, %s8
  %s10 = sld [smem:[#allocation0]]
  $region58: #{contrastive_hardest_negative_loss.3} parent=0
    _
  %s12 = ssub.s32 1, %s10
  %s13 = scalar_select 0, %s12, %s10
  // Predicated region
  $region2: #{contrastive_hardest_negative_loss.3} parent=0 // pred_check
    _
  $region3: #{contrastive_hardest_negative_loss.3} parent=0 // pred_check_branch
    %15 = sbr.rel (0) target = $region5
  $region4: #{contrastive_hardest_negative_loss.3} parent=0 // pred_region
    _
  $region5: #{contrastive_hardest_negative_loss.3} parent=0 // pred_fallthru
    _
  // Predicated region
  $region6: #{contrastive_hardest_negative_loss.3} parent=0 // pred_check
    _
  $region7: #{contrastive_hardest_negative_loss.3} parent=0 // pred_check_branch
    %17 = sbr.rel (0) target = $region9
  $region8: #{contrastive_hardest_negative_loss.3} parent=0 // pred_region
    _
  $region9: #{contrastive_hardest_negative_loss.3} parent=0 // pred_fallthru
    _
  // Predicated region
  $region10: #{contrastive_hardest_negative_loss.3} parent=0 // pred_check
    _
  $region11: #{contrastive_hardest_negative_loss.3} parent=0 // pred_check_branch
    %19 = sbr.rel (0) target = $region13
  $region12: #{contrastive_hardest_negative_loss.3} parent=0 // pred_region
    _
  $region13: #{contrastive_hardest_negative_loss.3} parent=0 // pred_fallthru
    _
  // Predicated region
  $region14: #{contrastive_hardest_negative_loss.3} parent=0 // pred_check
    _
  $region15: #{contrastive_hardest_negative_loss.3} parent=0 // pred_check_branch
    %21 = sbr.rel (0) target = $region17
  $region16: #{contrastive_hardest_negative_loss.3} parent=0 // pred_region
    _
  $region17: #{contrastive_hardest_negative_loss.3} parent=0 // pred_fallthru
    _
  %v22 = vld [vmem:[%s0] sm:$0xff]
  %v23 = vld [vmem:[%s0 + $0x8] sm:$0xff]
  %v24 = vld [vmem:[%s0 + $0x10] sm:$0xff]
  %v25 = vld [vmem:[%s0 + $0x18] sm:$0xff]
  %v26 = vld [vmem:[%s0 + $0x20] sm:$0xff]
  %v27 = vld [vmem:[%s1] sm:$0xff]
  %v28 = vld [vmem:[%s1 + $0x8] sm:$0xff]
  %v29 = vld [vmem:[%s1 + $0x10] sm:$0xff]
  %v30 = vld [vmem:[%s1 + $0x18] sm:$0xff]
  %v31 = vld [vmem:[%s1 + $0x20] sm:$0xff]
  %v32 = vlaneseq
  %v33 = vshrl.u32 %v32, 7
  %v34 = vadd.s32 %v33, 8
  %v35 = vadd.s32 %v33, 16
  %v36 = vadd.s32 %v33, 24
  %v37 = vadd.s32 %v33, 32
  %v38 = vadd.s32 %v33, 40
  %v39 = vld [vmem:[%s3] sm:$0xff]
  %v40 = vld [vmem:[%s3 + $0x8] sm:$0xff]
  %v41 = vld [vmem:[%s3 + $0x10] sm:$0xff]
  %v42 = vld [vmem:[%s3 + $0x18] sm:$0xff]
  %v43 = vld [vmem:[%s3 + $0x20] sm:$0xff]
  %v44 = vld [vmem:[%s3 + $0x28] sm:$0xff]
  %vm45 = vcmask 326656
  %v47 = vsel %vm45, %v39, 0
  %v50 = vsel %vm45, %v40, 0
  %v53 = vsel %vm45, %v41, 0
  %v56 = vsel %vm45, %v42, 0
  %v59 = vsel %vm45, %v43, 0
  %v62 = vsel %vm45, %v44, 0
  %64 = vmatprep.subr.mxu0 0.0
  %65 = vmatpush1.msra.mxu0 %v22
  %66 = vmatprep.subr.mxu0 0.0
  %67 = vmatpush1.msra.mxu0 %v23
  %68 = vmatprep.subr.mxu0 0.0
  %69 = vmatpush1.msra.mxu0 %v24
  %70 = vmatprep.subr.mxu0 0.0
  %71 = vmatpush1.msra.mxu0 %v25
  %72 = vmatprep.subr.mxu0 0.0
  %73 = vmatpush1.msra.mxu0 %v26
  %74 = vmatprep.subr.mxu0 0.0
  %75 = vmatpush1.msra.mxu0 0.0
  %76 = vmatprep.subr.mxu0 0.0
  %77 = vmatpush1.msra.mxu0 0.0
  %78 = vmatprep.subr.mxu0 0.0
  %79 = vmatpush1.msra.mxu0 0.0
  %80 = vmatprep.subr.mxu0 0.0
  %81 = vmatpush1.msra.mxu0 0.0
  %82 = vmatprep.subr.mxu0 0.0
  %83 = vmatpush1.msra.mxu0 0.0
  %84 = vmatprep.subr.mxu0 0.0
  %85 = vmatpush1.msra.mxu0 0.0
  %86 = vmatprep.subr.mxu0 0.0
  %87 = vmatpush1.msra.mxu0 0.0
  %88 = vmatprep.subr.mxu0 0.0
  %89 = vmatpush1.msra.mxu0 0.0
  %90 = vmatprep.subr.mxu0 0.0
  %91 = vmatpush1.msra.mxu0 0.0
  %92 = vmatprep.subr.mxu0 0.0
  %93 = vmatpush1.msra.mxu0 0.0
  %94 = vmatprep.subr.mxu0 0.0
  %95 = vmatpush1.msra.mxu0 0.0
  %96 = vmatprep.subr.mxu0 0.0
  %97 = vmatpush1.msra.mxu0 0.0
  %98 = vmatprep.subr.mxu0 0.0
  %99 = vmatpush1.msra.mxu0 0.0
  %100 = vmatprep.subr.mxu0 0.0
  %101 = vmatpush1.msra.mxu0 0.0
  %102 = vmatprep.subr.mxu0 0.0
  %103 = vmatpush1.msra.mxu0 0.0
  %104 = vmatprep.subr.mxu0 0.0
  %105 = vmatpush1.msra.mxu0 0.0
  %106 = vmatprep.subr.mxu0 0.0
  %107 = vmatpush1.msra.mxu0 0.0
  %108 = vmatprep.subr.mxu0 0.0
  %109 = vmatpush1.msra.mxu0 0.0
  %110 = vmatprep.subr.mxu0 0.0
  %111 = vmatpush1.msra.mxu0 0.0
  %112 = vmatprep.subr.mxu0 0.0
  %113 = vmatpush1.msra.mxu0 0.0
  %114 = vmatprep.subr.mxu0 0.0
  %115 = vmatpush1.msra.mxu0 0.0
  %116 = vmatprep.subr.mxu0 0.0
  %117 = vmatpush1.msra.mxu0 0.0
  %118 = vmatprep.subr.mxu0 0.0
  %119 = vmatpush1.msra.mxu0 0.0
  %120 = vmatprep.subr.mxu0 0.0
  %121 = vmatpush1.msra.mxu0 0.0
  %122 = vmatprep.subr.mxu0 0.0
  %123 = vmatpush1.msra.mxu0 0.0
  %124 = vmatprep.subr.mxu0 0.0
  %125 = vmatpush1.msra.mxu0 0.0
  %126 = vmatprep.subr.mxu0 0.0
  %127 = vmatpush1.msra.mxu0 0.0
  %128 = vmatprep.mubr.f32.mxu0 0.0
  %129 = vmatmul.mubr.f32.gmra.mrb[0].mxu0 %v47
  %v130 = vpop.f32.mrb[0].mxu0
  %v131 = vadd.f32 0.0, %v130
  %v132 = vpop.f32.mrb[0].mxu0
  %133 = vmatprep.mubr.f32.mxu0 0.0
  %134 = vmatmul.mubr.f32.gmra.mrb[0].mxu0 %v50
  %v135 = vpop.f32.mrb[0].mxu0
  %v136 = vadd.f32 0.0, %v135
  %v137 = vpop.f32.mrb[0].mxu0
  %138 = vmatprep.mubr.f32.mxu0 0.0
  %139 = vmatmul.mubr.f32.gmra.mrb[0].mxu0 %v53
  %v140 = vpop.f32.mrb[0].mxu0
  %v141 = vadd.f32 0.0, %v140
  %v142 = vpop.f32.mrb[0].mxu0
  %143 = vmatprep.mubr.f32.mxu0 0.0
  %144 = vmatmul.mubr.f32.gmra.mrb[0].mxu0 %v56
  %v145 = vpop.f32.mrb[0].mxu0
  %v146 = vadd.f32 0.0, %v145
  %v147 = vpop.f32.mrb[0].mxu0
  %148 = vmatprep.mubr.f32.mxu0 0.0
  %149 = vmatmul.mubr.f32.gmra.mrb[0].mxu0 %v59
  %v150 = vpop.f32.mrb[0].mxu0
  %v151 = vadd.f32 0.0, %v150
  %v152 = vpop.f32.mrb[0].mxu0
  %153 = vmatprep.mubr.f32.mxu0 0.0
  %154 = vmatmul.mubr.f32.gmra.mrb[0].mxu0 %v62
  %v155 = vpop.f32.mrb[0].mxu0
  %v156 = vadd.f32 0.0, %v155
  %v157 = vpop.f32.mrb[0].mxu0
  %158 = vdwg.mxu0
  %v159 = vmin.f32 %v131, %v151
  %v160 = vmin.f32 %v136, %v156
  %v161 = vmin.f32 %v159, %v160
  %v162 = vmin.f32 %v141, %v146
  %v163 = vmin.f32 %v161, %v162
  %v164 = vrot.slane %v163, 4
  %v165 = vmin.f32 %v163, %v164
  %v166 = vrot.slane %v165, 2
  %v167 = vmin.f32 %v165, %v166
  %v168 = vrot.slane %v167, 1
  %v169 = vmin.f32 %v167, %v168
  %vm170 = vcmp.eq.f32.partialorder %v131, %v169
  %vm171 = vcmp.eq.f32.partialorder %v136, %v169
  %vm172 = vcmp.eq.f32.partialorder %v141, %v169
  %vm173 = vcmp.eq.f32.partialorder %v146, %v169
  %vm174 = vcmp.eq.f32.partialorder %v151, %v169
  %vm175 = vcmp.eq.f32.partialorder %v156, %v169
  %v176 = vsel %vm170, %v33, 48
  %v177 = vsel %vm171, %v34, 48
  %v178 = vsel %vm172, %v35, 48
  %v179 = vsel %vm173, %v36, 48
  %v180 = vsel %vm174, %v37, 48
  %v181 = vsel %vm175, %v38, 48
  %vm182 = vcmp.lt.s32.totalorder %v176, %v180
  %v183 = vsel %vm182, %v176, %v180
  %vm184 = vcmp.lt.s32.totalorder %v177, %v181
  %v185 = vsel %vm184, %v177, %v181
  %vm186 = vcmp.lt.s32.totalorder %v183, %v185
  %v187 = vsel %vm186, %v183, %v185
  %vm188 = vcmp.lt.s32.totalorder %v178, %v179
  %v189 = vsel %vm188, %v178, %v179
  %vm190 = vcmp.lt.s32.totalorder %v187, %v189
  %v191 = vsel %vm190, %v187, %v189
  %v192 = vrot.slane %v191, 4
  %vm193 = vcmp.lt.s32.totalorder %v191, %v192
  %v194 = vsel %vm193, %v191, %v192
  %v195 = vrot.slane %v194, 2
  %vm196 = vcmp.lt.s32.totalorder %v194, %v195
  %v197 = vsel %vm196, %v194, %v195
  %v198 = vrot.slane %v197, 1
  %vm199 = vcmp.lt.s32.totalorder %v197, %v198
  %v200 = vsel %vm199, %v197, %v198
  %vm201 = vcmp.lt.f32.partialorder %v169, inf
  %v202 = vsel %vm201, %v169, inf
  %v203 = vsel %vm201, %v200, 0
  %v204 = vld [vmem:[%s2] sm:$0xff]
  %v205 = vld [vmem:[%s2 + $0x8] sm:$0xff]
  %v206 = vld [vmem:[%s2 + $0x10] sm:$0xff]
  %v207 = vld [vmem:[%s2 + $0x18] sm:$0xff]
  %v208 = vld [vmem:[%s2 + $0x20] sm:$0xff]
  %v209 = vld [vmem:[%s2 + $0x28] sm:$0xff]
  %v211 = vsel %vm45, %v204, 0
  %v214 = vsel %vm45, %v205, 0
  %v217 = vsel %vm45, %v206, 0
  %v220 = vsel %vm45, %v207, 0
  %v223 = vsel %vm45, %v208, 0
  %v226 = vsel %vm45, %v209, 0
  %228 = vmatprep.subr.mxu0 0.0
  %229 = vmatpush1.msra.mxu0 %v27
  %230 = vmatprep.subr.mxu0 0.0
  %231 = vmatpush1.msra.mxu0 %v28
  %232 = vmatprep.subr.mxu0 0.0
  %233 = vmatpush1.msra.mxu0 %v29
  %234 = vmatprep.subr.mxu0 0.0
  %235 = vmatpush1.msra.mxu0 %v30
  %236 = vmatprep.subr.mxu0 0.0
  %237 = vmatpush1.msra.mxu0 %v31
  %238 = vmatprep.subr.mxu0 0.0
  %239 = vmatpush1.msra.mxu0 0.0
  %240 = vmatprep.subr.mxu0 0.0
  %241 = vmatpush1.msra.mxu0 0.0
  %242 = vmatprep.subr.mxu0 0.0
  %243 = vmatpush1.msra.mxu0 0.0
  %244 = vmatprep.subr.mxu0 0.0
  %245 = vmatpush1.msra.mxu0 0.0
  %246 = vmatprep.subr.mxu0 0.0
  %247 = vmatpush1.msra.mxu0 0.0
  %248 = vmatprep.subr.mxu0 0.0
  %249 = vmatpush1.msra.mxu0 0.0
  %250 = vmatprep.subr.mxu0 0.0
  %251 = vmatpush1.msra.mxu0 0.0
  %252 = vmatprep.subr.mxu0 0.0
  %253 = vmatpush1.msra.mxu0 0.0
  %254 = vmatprep.subr.mxu0 0.0
  %255 = vmatpush1.msra.mxu0 0.0
  %256 = vmatprep.subr.mxu0 0.0
  %257 = vmatpush1.msra.mxu0 0.0
  %258 = vmatprep.subr.mxu0 0.0
  %259 = vmatpush1.msra.mxu0 0.0
  %260 = vmatprep.subr.mxu0 0.0
  %261 = vmatpush1.msra.mxu0 0.0
  %262 = vmatprep.subr.mxu0 0.0
  %263 = vmatpush1.msra.mxu0 0.0
  %264 = vmatprep.subr.mxu0 0.0
  %265 = vmatpush1.msra.mxu0 0.0
  %266 = vmatprep.subr.mxu0 0.0
  %267 = vmatpush1.msra.mxu0 0.0
  %268 = vmatprep.subr.mxu0 0.0
  %269 = vmatpush1.msra.mxu0 0.0
  %270 = vmatprep.subr.mxu0 0.0
  %271 = vmatpush1.msra.mxu0 0.0
  %272 = vmatprep.subr.mxu0 0.0
  %273 = vmatpush1.msra.mxu0 0.0
  %274 = vmatprep.subr.mxu0 0.0
  %275 = vmatpush1.msra.mxu0 0.0
  %276 = vmatprep.subr.mxu0 0.0
  %277 = vmatpush1.msra.mxu0 0.0
  %278 = vmatprep.subr.mxu0 0.0
  %279 = vmatpush1.msra.mxu0 0.0
  %280 = vmatprep.subr.mxu0 0.0
  %281 = vmatpush1.msra.mxu0 0.0
  %282 = vmatprep.subr.mxu0 0.0
  %283 = vmatpush1.msra.mxu0 0.0
  %284 = vmatprep.subr.mxu0 0.0
  %285 = vmatpush1.msra.mxu0 0.0
  %286 = vmatprep.subr.mxu0 0.0
  %287 = vmatpush1.msra.mxu0 0.0
  %288 = vmatprep.subr.mxu0 0.0
  %289 = vmatpush1.msra.mxu0 0.0
  %290 = vmatprep.subr.mxu0 0.0
  %291 = vmatpush1.msra.mxu0 0.0
  %292 = vmatprep.mubr.f32.mxu0 0.0
  %293 = vmatmul.mubr.f32.gmra.mrb[0].mxu0 %v211
  %v294 = vpop.f32.mrb[0].mxu0
  %v295 = vadd.f32 0.0, %v294
  %v296 = vpop.f32.mrb[0].mxu0
  %297 = vmatprep.mubr.f32.mxu0 0.0
  %298 = vmatmul.mubr.f32.gmra.mrb[0].mxu0 %v214
  %v299 = vpop.f32.mrb[0].mxu0
  %v300 = vadd.f32 0.0, %v299
  %v301 = vpop.f32.mrb[0].mxu0
  %302 = vmatprep.mubr.f32.mxu0 0.0
  %303 = vmatmul.mubr.f32.gmra.mrb[0].mxu0 %v217
  %v304 = vpop.f32.mrb[0].mxu0
  %v305 = vadd.f32 0.0, %v304
  %v306 = vpop.f32.mrb[0].mxu0
  %307 = vmatprep.mubr.f32.mxu0 0.0
  %308 = vmatmul.mubr.f32.gmra.mrb[0].mxu0 %v220
  %v309 = vpop.f32.mrb[0].mxu0
  %v310 = vadd.f32 0.0, %v309
  %v311 = vpop.f32.mrb[0].mxu0
  %312 = vmatprep.mubr.f32.mxu0 0.0
  %313 = vmatmul.mubr.f32.gmra.mrb[0].mxu0 %v223
  %v314 = vpop.f32.mrb[0].mxu0
  %v315 = vadd.f32 0.0, %v314
  %v316 = vpop.f32.mrb[0].mxu0
  %317 = vmatprep.mubr.f32.mxu0 0.0
  %318 = vmatmul.mubr.f32.gmra.mrb[0].mxu0 %v226
  %v319 = vpop.f32.mrb[0].mxu0
  %v320 = vadd.f32 0.0, %v319
  %v321 = vpop.f32.mrb[0].mxu0
  %322 = vdwg.mxu0
  %v323 = vmin.f32 %v295, %v315
  %v324 = vmin.f32 %v300, %v320
  %v325 = vmin.f32 %v323, %v324
  %v326 = vmin.f32 %v305, %v310
  %v327 = vmin.f32 %v325, %v326
  %v328 = vrot.slane %v327, 4
  %v329 = vmin.f32 %v327, %v328
  %v330 = vrot.slane %v329, 2
  %v331 = vmin.f32 %v329, %v330
  %v332 = vrot.slane %v331, 1
  %v333 = vmin.f32 %v331, %v332
  %vm334 = vcmp.eq.f32.partialorder %v295, %v333
  %vm335 = vcmp.eq.f32.partialorder %v300, %v333
  %vm336 = vcmp.eq.f32.partialorder %v305, %v333
  %vm337 = vcmp.eq.f32.partialorder %v310, %v333
  %vm338 = vcmp.eq.f32.partialorder %v315, %v333
  %vm339 = vcmp.eq.f32.partialorder %v320, %v333
  %v340 = vsel %vm334, %v33, 48
  %v341 = vsel %vm335, %v34, 48
  %v342 = vsel %vm336, %v35, 48
  %v343 = vsel %vm337, %v36, 48
  %v344 = vsel %vm338, %v37, 48
  %v345 = vsel %vm339, %v38, 48
  %vm346 = vcmp.lt.s32.totalorder %v340, %v344
  %v347 = vsel %vm346, %v340, %v344
  %vm348 = vcmp.lt.s32.totalorder %v341, %v345
  %v349 = vsel %vm348, %v341, %v345
  %vm350 = vcmp.lt.s32.totalorder %v347, %v349
  %v351 = vsel %vm350, %v347, %v349
  %vm352 = vcmp.lt.s32.totalorder %v342, %v343
  %v353 = vsel %vm352, %v342, %v343
  %vm354 = vcmp.lt.s32.totalorder %v351, %v353
  %v355 = vsel %vm354, %v351, %v353
  %v356 = vrot.slane %v355, 4
  %vm357 = vcmp.lt.s32.totalorder %v355, %v356
  %v358 = vsel %vm357, %v355, %v356
  %v359 = vrot.slane %v358, 2
  %vm360 = vcmp.lt.s32.totalorder %v358, %v359
  %v361 = vsel %vm360, %v358, %v359
  %v362 = vrot.slane %v361, 1
  %vm363 = vcmp.lt.s32.totalorder %v361, %v362
  %v364 = vsel %vm363, %v361, %v362
  %vm365 = vcmp.lt.f32.partialorder %v333, inf
  %v366 = vsel %vm365, %v333, inf
  %v367 = vsel %vm365, %v364, 0
  %v368 = vmul.f32 %v22, %v22
  %v369 = vmul.f32 %v23, %v23
  %v370 = vmul.f32 %v24, %v24
  %v371 = vmul.f32 %v25, %v25
  %v372 = vmul.f32 %v26, %v26
  %v373 = vadd.f32 %v368, %v369
  %v374 = vadd.f32 %v373, %v370
  %v375 = vadd.f32 %v374, %v371
  %v376 = vadd.f32 %v375, %v372
  %v377 = vrot.slane %v376, 4
  %v378 = vadd.f32 %v376, %v377
  %v379 = vrot.slane %v378, 2
  %v380 = vadd.f32 %v378, %v379
  %v381 = vrot.slane %v380, 1
  %v382 = vadd.f32 %v380, %v381
  %v383 = vmul.f32 %v27, %v27
  %v384 = vmul.f32 %v28, %v28
  %v385 = vmul.f32 %v29, %v29
  %v386 = vmul.f32 %v30, %v30
  %v387 = vmul.f32 %v31, %v31
  %v388 = vadd.f32 %v383, %v384
  %v389 = vadd.f32 %v388, %v385
  %v390 = vadd.f32 %v389, %v386
  %v391 = vadd.f32 %v390, %v387
  %v392 = vrot.slane %v391, 4
  %v393 = vadd.f32 %v391, %v392
  %v394 = vrot.slane %v393, 2
  %v395 = vadd.f32 %v393, %v394
  %v396 = vrot.slane %v395, 1
  %v397 = vadd.f32 %v395, %v396
  %v398 = vsub.f32 %v382, 1.0
  %v399 = vadd.f32 %v202, %v398
  %v400 = vmax.f32 %v399, 0.0
  %v401 = vadd.f32 %v400, 1e-07
  %v402 = vrsqrt.pop %v401
  %v403 = vmul.f32 %v401, %v402
  %vm404 = vcmp.eq.f32.partialorder %v401, inf
  %v405 = vsel %vm404, %v401, %v403
  %vm406 = vcmp.eq.f32.partialorder %v401, 0.0
  %v407 = vand.u32 %v401, 2147483648
  %v408 = vsel %vm406, %v407, %v405
  %409 = vst [vmem:[%s4] sm:$0x1] %v408
  %410 = vst [vmem:[%s5] sm:$0x1] %v203
  %v411 = vsub.f32 %v397, 1.0
  %v412 = vadd.f32 %v366, %v411
  %v413 = vmax.f32 %v412, 0.0
  %v414 = vadd.f32 %v413, 1e-07
  %v415 = vrsqrt.pop %v414
  %v416 = vmul.f32 %v414, %v415
  %vm417 = vcmp.eq.f32.partialorder %v414, inf
  %v418 = vsel %vm417, %v414, %v416
  %vm419 = vcmp.eq.f32.partialorder %v414, 0.0
  %v420 = vand.u32 %v414, 2147483648
  %v421 = vsel %vm419, %v420, %v418
  %422 = vst [vmem:[%s6] sm:$0x1] %v421
  %423 = vst [vmem:[%s7] sm:$0x1] %v367
  %v424 = vsub.f32 %v22, %v27
  %v425 = vsub.f32 %v23, %v28
  %v426 = vsub.f32 %v24, %v29
  %v427 = vsub.f32 %v25, %v30
  %v428 = vsub.f32 %v26, %v31
  %v429 = vmul.f32 %v424, %v424
  %v430 = vmul.f32 %v425, %v425
  %v431 = vmul.f32 %v426, %v426
  %v432 = vmul.f32 %v427, %v427
  %v433 = vmul.f32 %v428, %v428
  %v434 = vadd.f32 %v429, %v430
  %v435 = vadd.f32 %v434, %v431
  %v436 = vadd.f32 %v435, %v432
  %v437 = vadd.f32 %v436, %v433
  %v438 = vrot.slane %v437, 4
  %v439 = vadd.f32 %v437, %v438
  %v440 = vrot.slane %v439, 2
  %v441 = vadd.f32 %v439, %v440
  %v442 = vrot.slane %v441, 1
  %v443 = vadd.f32 %v441, %v442
  %444 = vst [vmem:[%s8] sm:$0x1] %v443
  // Predicated region
  $region18: #{contrastive_hardest_negative_loss.3} parent=0 // pred_check
    _
  $region19: #{contrastive_hardest_negative_loss.3} parent=0 // pred_check_branch
    %446 = sbr.rel (0) target = $region21
  $region20: #{contrastive_hardest_negative_loss.3} parent=0 // pred_region
    _
  $region21: #{contrastive_hardest_negative_loss.3} parent=0 // pred_fallthru
    _
  // Predicated region
  $region22: #{contrastive_hardest_negative_loss.3} parent=0 // pred_check
    _
  $region23: #{contrastive_hardest_negative_loss.3} parent=0 // pred_check_branch
    %448 = sbr.rel (0) target = $region25
  $region24: #{contrastive_hardest_negative_loss.3} parent=0 // pred_region
    _
  $region25: #{contrastive_hardest_negative_loss.3} parent=0 // pred_fallthru
    _
  // Predicated region
  $region26: #{contrastive_hardest_negative_loss.3} parent=0 // pred_check
    _
  $region27: #{contrastive_hardest_negative_loss.3} parent=0 // pred_check_branch
    %450 = sbr.rel (0) target = $region29
  $region28: #{contrastive_hardest_negative_loss.3} parent=0 // pred_region
    _
  $region29: #{contrastive_hardest_negative_loss.3} parent=0 // pred_fallthru
    _
  // Predicated region
  $region30: #{contrastive_hardest_negative_loss.3} parent=0 // pred_check
    _
  $region31: #{contrastive_hardest_negative_loss.3} parent=0 // pred_check_branch
    %452 = sbr.rel (0) target = $region33
  $region32: #{contrastive_hardest_negative_loss.3} parent=0 // pred_region
    _
  $region33: #{contrastive_hardest_negative_loss.3} parent=0 // pred_fallthru
    _
  // Predicated region
  $region34: #{contrastive_hardest_negative_loss.3} parent=0 // pred_check
    _
  $region35: #{contrastive_hardest_negative_loss.3} parent=0 // pred_check_branch
    %454 = sbr.rel (0) target = $region37
  $region36: #{contrastive_hardest_negative_loss.3} parent=0 // pred_region
    _
  $region37: #{contrastive_hardest_negative_loss.3} parent=0 // pred_fallthru
    _
  // Predicated region
  $region38: #{contrastive_hardest_negative_loss.3} parent=0 // pred_check
    _
  $region39: #{contrastive_hardest_negative_loss.3} parent=0 // pred_check_branch
    %456 = sbr.rel (0) target = $region41
  $region40: #{contrastive_hardest_negative_loss.3} parent=0 // pred_region
    _
  $region41: #{contrastive_hardest_negative_loss.3} parent=0 // pred_fallthru
    _
  // Predicated region
  $region42: #{contrastive_hardest_negative_loss.3} parent=0 // pred_check
    _
  $region43: #{contrastive_hardest_negative_loss.3} parent=0 // pred_check_branch
    %458 = sbr.rel (0) target = $region45
  $region44: #{contrastive_hardest_negative_loss.3} parent=0 // pred_region
    _
  $region45: #{contrastive_hardest_negative_loss.3} parent=0 // pred_fallthru
    _
  // Predicated region
  $region46: #{contrastive_hardest_negative_loss.3} parent=0 // pred_check
    _
  $region47: #{contrastive_hardest_negative_loss.3} parent=0 // pred_check_branch
    %460 = sbr.rel (0) target = $region49
  $region48: #{contrastive_hardest_negative_loss.3} parent=0 // pred_region
    _
  $region49: #{contrastive_hardest_negative_loss.3} parent=0 // pred_fallthru
    _
  // Predicated region
  $region50: #{contrastive_hardest_negative_loss.3} parent=0 // pred_check
    _
  $region51: #{contrastive_hardest_negative_loss.3} parent=0 // pred_check_branch
    %462 = sbr.rel (0) target = $region53
  $region52: #{contrastive_hardest_negative_loss.3} parent=0 // pred_region
    _
  $region53: #{contrastive_hardest_negative_loss.3} parent=0 // pred_fallthru
    _
  // Predicated region
  $region54: #{contrastive_hardest_negative_loss.3} parent=0 // pred_check
    _
  $region55: #{contrastive_hardest_negative_loss.3} parent=0 // pred_check_branch
    %464 = sbr.rel (0) target = $region57
  $region56: #{contrastive_hardest_negative_loss.3} parent=0 // pred_region
    _
  $region57: #{contrastive_hardest_negative_loss.3} parent=0 // pred_fallthru
    _

</llo_original>
